<compile_context>
chip_gen: v5e
topology: v5e:2x2
jax: 0.10.0
libtpu: 0.0.40
codegen_flags: <defaults>
</compile_context>

<pallas_src>
import functools

import jax
import jax.numpy as jnp
from jax import lax
from jax.experimental import pallas as pl
from jax.experimental.pallas import tpu as pltpu

LANE = 128                      # vreg lane width
SUBLANE = 8                     # f32 vreg sublane count
TARGET_BLOCK_BYTES = 2 << 20    # ~2 MiB per input block per pipeline buffer


def _num_tensorcores() -> int:
    """TensorCores per chip: 2 on megacore parts (v4 / v7x), 1 on v5e / v6e."""
    try:
        kind = jax.local_devices()[0].device_kind.lower()
    except Exception:
        return 1
    return 2 if ("v7" in kind or "7x" in kind or "v4" in kind) else 1


def _l1_sum_kernel(p_ref, t_ref, o_ref, *, tile_rows, valid_rows,
                   steps_per_part, num_tiles):
    """Accumulate per-lane partial sums of |p - t| into o_ref (1, 8, 128)."""
    c = pl.program_id(0)            # partition ("parallel" axis)
    i = pl.program_id(1)            # reduction step ("arbitrary" axis)

    @pl.when(i == 0)
    def _():
        o_ref[...] = jnp.zeros_like(o_ref)

    g = c * steps_per_part + i      # global tile index

    def accumulate(mask_tail):
        p = p_ref[...]
        t = t_ref[...]
        if jnp.dtype(p.dtype).itemsize < 4:
            # Narrow dtypes: sub/abs packed in the native dtype, widen after.
            d = jnp.abs(p - t).astype(jnp.float32)
        else:
            d = jnp.abs(p.astype(jnp.float32) - t.astype(jnp.float32))
        if mask_tail:
            # Ragged last tile: rows >= valid_rows are Pallas block padding.
            row = lax.broadcasted_iota(jnp.int32, d.shape, 0) + g * tile_rows
            d = jnp.where(row < valid_rows, d, 0.0)
        # (tile_rows, 128) -> (tile_rows//8, 8, 128); summing the leading axis
        # is pure VPU element-wise adds — free in the DMA-bound regime.
        o_ref[...] += d.reshape(-1, SUBLANE, LANE).sum(axis=0, keepdims=True)

    if valid_rows % tile_rows == 0:
        @pl.when(g < num_tiles)       # skip padded steps of the last partition
        def _():
            accumulate(False)
    else:
        @pl.when(g < num_tiles - 1)
        def _():
            accumulate(False)

        @pl.when(g == num_tiles - 1)  # only the ragged last tile pays the mask
        def _():
            accumulate(True)


def _abs_diff_sum_f32(p, t):
    """Plain-jnp sum(|p - t|) in f32 (fused; used for tails / tiny inputs)."""
    if jnp.dtype(p.dtype).itemsize < 4 and p.dtype == t.dtype:
        return jnp.sum(jnp.abs(p - t).astype(jnp.float32))
    return jnp.sum(jnp.abs(p.astype(jnp.float32) - t.astype(jnp.float32)))


def l1_loss(preds, targets):
    """mean(|preds - targets|), matching torch.nn.L1Loss(reduction='mean')."""
    assert preds.shape == targets.shape, "L1Loss expects matching shapes"
    n = preds.size
    if n == 0:
        return jnp.float32(jnp.nan)   # torch returns NaN for empty inputs

    p = preds.reshape(-1)             # free; dtype preserved in HBM
    t = targets.reshape(-1)

    itemsize = jnp.dtype(preds.dtype).itemsize
    rows = n // LANE                  # number of full 128-wide rows
    rem = n - rows * LANE             # ragged (< 128) element tail

    # Rows per block: ~2 MiB of the input dtype, rounded down to the dtype's
    # native sublane pack (8 rows f32, 16 bf16/f16, 32 int8/fp8).
    max_tile_rows = TARGET_BLOCK_BYTES // (LANE * itemsize)
    row_pack = max(SUBLANE, (SUBLANE * 4) // itemsize)
    tile_rows = min(max_tile_rows, (rows // row_pack) * row_pack)

    total = jnp.float32(0.0)

    if tile_rows >= row_pack:
        num_tiles = pl.cdiv(rows, tile_rows)
        num_parts = min(_num_tensorcores(), num_tiles)
        steps = pl.cdiv(num_tiles, num_parts)

        # Full (rows, 128) view feeds the kernel; the ragged last tile is
        # masked in-kernel, so no tile-aligned prefix slice (== full HBM copy)
        # is materialized in front of the pallas_call.  Only when n % 128 != 0
        # does XLA still have to materialize the row-aligned prefix.
        if rem == 0:
            pb, tb = p.reshape(rows, LANE), t.reshape(rows, LANE)
        else:
            pb = p[:rows * LANE].reshape(rows, LANE)
            tb = t[:rows * LANE].reshape(rows, LANE)

        def in_map(c, i):
            # Clamp padded trailing steps to a valid tile; their contribution
            # is skipped in-kernel via pl.when(g < num_tiles).
            return (jnp.minimum(c * steps + i, num_tiles - 1), 0)

        block_bytes = tile_rows * LANE * itemsize
        # 2 inputs x 2 pipeline buffers x block, x2 headroom; >= 16 MiB floor,
        # capped well under every generation's physical VMEM.
        vmem_limit = int(min(32 << 20,
                             max(16 << 20, 8 * block_bytes + (4 << 20))))

        acc = pl.pallas_call(
            functools.partial(_l1_sum_kernel,
                              tile_rows=tile_rows, valid_rows=rows,
                              steps_per_part=steps, num_tiles=num_tiles),
            out_shape=jax.ShapeDtypeStruct((num_parts, SUBLANE, LANE),
                                           jnp.float32),
            grid_spec=pltpu.PrefetchScalarGridSpec(
                num_scalar_prefetch=0,
                grid=(num_parts, steps),
                in_specs=[
                    pl.BlockSpec((tile_rows, LANE), in_map),
                    pl.BlockSpec((tile_rows, LANE), in_map),
                ],
                out_specs=pl.BlockSpec((1, SUBLANE, LANE),
                                       lambda c, i: (c, 0, 0)),
            ),
            compiler_params=pltpu.CompilerParams(
                dimension_semantics=("parallel", "arbitrary"),
                vmem_limit_bytes=vmem_limit,
            ),
        )(pb, tb)
        total = total + jnp.sum(acc)

        if rem > 0:
            # Ragged < 128-element tail: negligible, fused plain jnp.
            total = total + _abs_diff_sum_f32(p[rows * LANE:], t[rows * LANE:])
    else:
        # Tiny input (< one packed tile of rows): plain fused jnp.
        total = total + _abs_diff_sum_f32(p, t)

    return total / jnp.float32(n)


if __name__ == "__main__":
    key = jax.random.PRNGKey(0)
    kp, kt, kp2, kt2, kp3, kt3 = jax.random.split(key, 6)

    # 1) Lane-aligned f32 case: 2*4*16*16 = 2048 elements = 16 rows of 128.
    shape = (2, 4, 16, 16)
    preds = jax.random.normal(kp, shape, dtype=jnp.float32)
    targets = jax.random.normal(kt, shape, dtype=jnp.float32)
    loss = l1_loss(preds, targets)
    jax.block_until_ready(loss)
    ref = jnp.mean(jnp.abs(preds - targets))
    assert jnp.allclose(loss, ref, rtol=1e-5, atol=1e-6), (loss, ref)

    # 2) Ragged bf16 case: 7*11*62 = 4774 = 37 rows of 128 + 38-element tail;
    #    exercises the in-kernel partial-tile mask and the jnp tail.
    shape2 = (7, 11, 62)
    preds2 = jax.random.normal(kp2, shape2, dtype=jnp.bfloat16)
    targets2 = jax.random.normal(kt2, shape2, dtype=jnp.bfloat16)
    loss2 = l1_loss(preds2, targets2)
    jax.block_until_ready(loss2)
    ref2 = (jnp.sum(jnp.abs(preds2 - targets2).astype(jnp.float32))
            / jnp.float32(preds2.size))
    assert jnp.allclose(loss2, ref2, rtol=1e-4, atol=1e-6), (loss2, ref2)

    # 3) Multi-tile f32 case with a partial last tile (5120 rows vs 4096-row
    #    tiles): exercises the multi-step pipeline + mask path.
    shape3 = (5, 1024, 128)
    preds3 = jax.random.normal(kp3, shape3, dtype=jnp.float32)
    targets3 = jax.random.normal(kt3, shape3, dtype=jnp.float32)
    loss3 = l1_loss(preds3, targets3)
    jax.block_until_ready(loss3)
    ref3 = jnp.mean(jnp.abs(preds3 - targets3))
    assert jnp.allclose(loss3, ref3, rtol=1e-5, atol=1e-6), (loss3, ref3)

    print("KERNEL_OK")
</pallas_src>

<mosaic_0001>
module attributes {stable_mosaic.version = 11 : i64} {
  func.func @_l1_sum_kernel(%arg0: i32, %arg1: i32, %arg2: memref<16x128xf32, #tpu.memory_space<vmem>>, %arg3: memref<16x128xf32, #tpu.memory_space<vmem>>, %arg4: memref<1x8x128xf32, #tpu.memory_space<vmem>>) attributes {dimension_semantics = [#tpu.dimension_semantics<parallel>, #tpu.dimension_semantics<arbitrary>], iteration_bounds = array<i64: 1, 1>, scalar_prefetch = 0 : i64, scratch_operands = 0 : i64, tpu.core_type = #tpu.core_type<tc>, window_params = [{transform_indices = @transform_0, window_bounds = array<i64: 16, 128>}, {transform_indices = @transform_1, window_bounds = array<i64: 16, 128>}, {transform_indices = @transform_2, window_bounds = array<i64: 1, 8, 128>}]} {
    %c0_i32 = arith.constant 0 : i32
    %0 = arith.cmpi eq, %arg1, %c0_i32 : i32
    %1 = arith.extui %0 : i1 to i32
    %c0_i32_0 = arith.constant 0 : i32
    %2 = arith.cmpi ne, %1, %c0_i32_0 : i32
    scf.if %2 {
      %cst = arith.constant 0.000000e+00 : f32
      %8 = vector.broadcast %cst : f32 to vector<1x8x128xf32>
      %c0 = arith.constant 0 : index
      %c0_3 = arith.constant 0 : index
      %c0_4 = arith.constant 0 : index
      %9 = vector.load %arg4[%c0, %c0_3, %c0_4] : memref<1x8x128xf32, #tpu.memory_space<vmem>>, vector<1x8x128xf32>
      tpu.vector_store %arg4[%c0, %c0_3, %c0_4], %8 {strides = array<i32>} : memref<1x8x128xf32, #tpu.memory_space<vmem>>, vector<1x8x128xf32>,
    } else {
    }
    %c1_i32 = arith.constant 1 : i32
    %3 = arith.muli %arg0, %c1_i32 : i32
    %4 = arith.addi %3, %arg1 : i32
    %c1_i32_1 = arith.constant 1 : i32
    %5 = arith.cmpi slt, %4, %c1_i32_1 : i32
    %6 = arith.extui %5 : i1 to i32
    %c0_i32_2 = arith.constant 0 : i32
    %7 = arith.cmpi ne, %6, %c0_i32_2 : i32
    scf.if %7 {
      %c0 = arith.constant 0 : index
      %c0_3 = arith.constant 0 : index
      %8 = vector.load %arg2[%c0, %c0_3] : memref<16x128xf32, #tpu.memory_space<vmem>>, vector<16x128xf32>
      %c0_4 = arith.constant 0 : index
      %c0_5 = arith.constant 0 : index
      %9 = vector.load %arg3[%c0_4, %c0_5] : memref<16x128xf32, #tpu.memory_space<vmem>>, vector<16x128xf32>
      %10 = arith.subf %8, %9 : vector<16x128xf32>
      %11 = math.absf %10 : vector<16x128xf32>
      %c0_6 = arith.constant 0 : index
      %c0_7 = arith.constant 0 : index
      %c0_8 = arith.constant 0 : index
      %12 = vector.load %arg4[%c0_6, %c0_7, %c0_8] : memref<1x8x128xf32, #tpu.memory_space<vmem>>, vector<1x8x128xf32>
      %13 = vector.shape_cast %11 : vector<16x128xf32> to vector<2x8x128xf32>
      %cst = arith.constant dense<0.000000e+00> : vector<8x128xf32>
      %14 = vector.multi_reduction <add>, %13, %cst [0] : vector<2x8x128xf32> to vector<8x128xf32>
      %15 = vector.shape_cast %14 : vector<8x128xf32> to vector<1x8x128xf32>
      %16 = arith.addf %12, %15 : vector<1x8x128xf32>
      %c0_9 = arith.constant 0 : index
      %c0_10 = arith.constant 0 : index
      %c0_11 = arith.constant 0 : index
      %17 = vector.load %arg4[%c0_9, %c0_10, %c0_11] : memref<1x8x128xf32, #tpu.memory_space<vmem>>, vector<1x8x128xf32>
      tpu.vector_store %arg4[%c0_9, %c0_10, %c0_11], %16 {strides = array<i32>} : memref<1x8x128xf32, #tpu.memory_space<vmem>>, vector<1x8x128xf32>,
    } else {
    }
    return
  }
  func.func @transform_0(%arg0: i32, %arg1: i32) -> (i32, i32) {
    %c1_i32 = arith.constant 1 : i32
    %0 = arith.muli %arg0, %c1_i32 : i32
    %1 = arith.addi %0, %arg1 : i32
    %c0_i32 = arith.constant 0 : i32
    %2 = arith.minsi %1, %c0_i32 : i32
    %c0_i32_0 = arith.constant 0 : i32
    %c0_i32_1 = arith.constant 0 : i32
    return %2, %c0_i32_0 : i32, i32
  }
  func.func @transform_1(%arg0: i32, %arg1: i32) -> (i32, i32) {
    %c1_i32 = arith.constant 1 : i32
    %0 = arith.muli %arg0, %c1_i32 : i32
    %1 = arith.addi %0, %arg1 : i32
    %c0_i32 = arith.constant 0 : i32
    %2 = arith.minsi %1, %c0_i32 : i32
    %c0_i32_0 = arith.constant 0 : i32
    %c0_i32_1 = arith.constant 0 : i32
    return %2, %c0_i32_0 : i32, i32
  }
  func.func @transform_2(%arg0: i32, %arg1: i32) -> (i32, i32, i32) {
    %c0_i32 = arith.constant 0 : i32
    %c0_i32_0 = arith.constant 0 : i32
    %c0_i32_1 = arith.constant 0 : i32
    return %arg0, %c0_i32, %c0_i32_0 : i32, i32, i32
  }
}

</mosaic_0001>

<llo_original>
// kernel: tpu_custom_call.1
$region0: #{tpu_custom_call.1}
  #allocation0 [shape = 'u32[]', space=smem, size = 0x4, offset = 0x4, fixed_abs, tag = 'smem constant byte address 0x4 - core index']
  #allocation1 [shape = 'u32[72,128]{1,0:T(1,128)}', space=vmem, size = 0x9000, scoped, tag = 'internal scratch']
  %s0 = inlined_call_operand.hbm [shape: f32[16,128], index: 0, kind: input, shape index: {}]
  %s1 = inlined_call_operand.hbm [shape: f32[16,128], index: 1, kind: input, shape index: {}]
  %s2 = inlined_call_operand.hbm [shape: f32[1,8,128], index: 2, kind: output, shape index: {}]
  %s3 = sld [smem:[#allocation0]]
  $region34: #{tpu_custom_call.1} parent=0
    _
  %s5 = ssub.s32 1, %s3
  %s6 = scalar_select 0, %s5, %s3
  $region1: #{tpu_custom_call.1} parent=0
    #allocation2 [shape = 'u8[8192]{0}', space=vmem, size = 0x2000, scoped, tag = 'input window, operand 0, single buffered']
    #allocation3 [shape = 's32[1]{0}', space=sflag, size = 0x4, scoped, tag = 'scoped memory for tpu_custom_call.1']
    #allocation4 [shape = 's32[1]{0}', space=sflag, size = 0x4, scoped, tag = 'scoped memory for tpu_custom_call.1']
    #allocation5 [shape = 'u8[8192]{0}', space=vmem, size = 0x2000, scoped, tag = 'input window, operand 1, single buffered']
    #allocation6 [shape = 's32[1]{0}', space=sflag, size = 0x4, scoped, tag = 'scoped memory for tpu_custom_call.1']
    #allocation7 [shape = 'u8[4096]{0}', space=vmem, size = 0x1000, scoped, tag = 'output window, operand 0, single buffered']
    %7 = vsyncpa [#allocation3], 0
    %8 = vsyncpa [#allocation6], 0
    %9 = vsyncpa [#allocation4], 0
    // Predicated region
    $region2: #{tpu_custom_call.1} parent=1 // pred_check
      _
    $region3: #{tpu_custom_call.1} parent=1 // pred_check_branch
      %11 = sbr.rel (0) target = $region5
    $region4: #{tpu_custom_call.1} parent=1 // pred_region
      %s12 = sadd.s32 0, 0
      %p13 = scmp.lt.s32.totalorder %s12, 0
      %s14 = scalar_select %p13, %s12, 0
      %s15 = smul.u32 2, %s14
      %17 = vsyncadd [#allocation3], 0
      %s18 = smul.addr %s15, 8
      %s19 = scalar_lea.hbm %s0, %s18
      %s20 = sshll.u32 %s19, 4
      %s21 = int_to_ptr.hbm [resolvable:$true] %s20
      %s22 = sshll.u32 [#allocation2], 4
      %s23 = int_to_ptr.vmem [resolvable:$true] %s22
      %28 = dma.hbm_to_vmem [thread:$0]  %s21, 256, %s23, [#allocation3], 128, 128, 8
    $region5: #{tpu_custom_call.1} parent=1 // pred_fallthru
      _
    // Predicated region
    $region6: #{tpu_custom_call.1} parent=1 // pred_check
      _
    $region7: #{tpu_custom_call.1} parent=1 // pred_check_branch
      %30 = sbr.rel (0) target = $region9
    $region8: #{tpu_custom_call.1} parent=1 // pred_region
      %s31 = sadd.s32 0, 0
      %p32 = scmp.lt.s32.totalorder %s31, 0
      %s33 = scalar_select %p32, %s31, 0
      %s34 = smul.u32 2, %s33
      %36 = vsyncadd [#allocation6], 0
      %s37 = smul.addr %s34, 8
      %s38 = scalar_lea.hbm %s1, %s37
      %s39 = sshll.u32 %s38, 4
      %s40 = int_to_ptr.hbm [resolvable:$true] %s39
      %s41 = sshll.u32 [#allocation5], 4
      %s42 = int_to_ptr.vmem [resolvable:$true] %s41
      %47 = dma.hbm_to_vmem [thread:$0]  %s40, 256, %s42, [#allocation6], 128, 128, 8
    $region9: #{tpu_custom_call.1} parent=1 // pred_fallthru
      _
    // Predicated region
    $region10: #{tpu_custom_call.1} parent=1 // pred_check
      _
    $region11: #{tpu_custom_call.1} parent=1 // pred_check_branch
      %49 = sbr.rel (0) target = $region13
    $region12: #{tpu_custom_call.1} parent=1 // pred_region
      %51 = dma.done [#allocation3], 256
    $region13: #{tpu_custom_call.1} parent=1 // pred_fallthru
      _
    // Predicated region
    $region14: #{tpu_custom_call.1} parent=1 // pred_check
      _
    $region15: #{tpu_custom_call.1} parent=1 // pred_check_branch
      %53 = sbr.rel (0) target = $region17
    $region16: #{tpu_custom_call.1} parent=1 // pred_region
      %55 = dma.done [#allocation6], 256
    $region17: #{tpu_custom_call.1} parent=1 // pred_fallthru
      _
    %s56 = sadd.s32 0, 0
    %p57 = scmp.lt.s32.totalorder %s56, 0
    %s58 = scalar_select %p57, %s56, 0
    %s59 = smul.u32 2, %s58
    %s60 = sadd.s32 0, 0
    %p61 = scmp.lt.s32.totalorder %s60, 0
    %s62 = scalar_select %p61, %s60, 0
    %s63 = smul.u32 2, %s62
    %p64 = scmp.eq.s32.totalorder 0, 0
    // Predicated region
    $region18: #{tpu_custom_call.1} parent=1 // pred_check
      %p65 = pneg %p64
    $region19: #{tpu_custom_call.1} parent=1 // pred_check_branch
      %67 = sbr.rel (%p65) target = $region21
    $region20: #{tpu_custom_call.1} parent=1 // pred_region
      %68 = vst [vmem:[#allocation7] sm:$0xff] 0.0
    $region21: #{tpu_custom_call.1} parent=1 // pred_fallthru
      _
    %s69 = sadd.s32 0, 0
    %p70 = scmp.lt.s32.totalorder %s69, 1
    // Predicated region
    $region22: #{tpu_custom_call.1} parent=1 // pred_check
      %p71 = pneg %p70
    $region23: #{tpu_custom_call.1} parent=1 // pred_check_branch
      %73 = sbr.rel (%p71) target = $region25
    $region24: #{tpu_custom_call.1} parent=1 // pred_region
      %v74 = vld [vmem:[#allocation2] sm:$0xff]
      %v75 = vld [vmem:[#allocation2 + $0x8] sm:$0xff]
      %v76 = vld [vmem:[#allocation5] sm:$0xff]
      %v77 = vld [vmem:[#allocation5 + $0x8] sm:$0xff]
      %v78 = vsub.f32 %v74, %v76
      %v79 = vsub.f32 %v75, %v77
      %v80 = vand.u32 2147483647, %v78
      %v81 = vand.u32 2147483647, %v79
      %v82 = vld [vmem:[#allocation7] sm:$0xff]
      %v83 = vadd.f32 %v80, %v81
      %v84 = vadd.f32 %v82, %v83
      %85 = vst [vmem:[#allocation7] sm:$0xff] %v84
    $region25: #{tpu_custom_call.1} parent=1 // pred_fallthru
      _
    // Predicated region
    $region26: #{tpu_custom_call.1} parent=1 // pred_check
      _
    $region27: #{tpu_custom_call.1} parent=1 // pred_check_branch
      %87 = sbr.rel (0) target = $region29
    $region28: #{tpu_custom_call.1} parent=1 // pred_region
      %89 = vsyncadd [#allocation4], 0
      %s91 = sshll.u32 [#allocation7], 4
      %s92 = int_to_ptr.vmem [resolvable:$true] %s91
      %s93 = sshll.u32 %s2, 4
      %s94 = int_to_ptr.hbm [resolvable:$true] %s93
      %96 = dma.vmem_to_hbm [thread:$0]  %s92, 128, %s94, [#allocation4]
    $region29: #{tpu_custom_call.1} parent=1 // pred_fallthru
      _
    // Predicated region
    $region30: #{tpu_custom_call.1} parent=1 // pred_check
      _
    $region31: #{tpu_custom_call.1} parent=1 // pred_check_branch
      %98 = sbr.rel (0) target = $region33
    $region32: #{tpu_custom_call.1} parent=1 // pred_region
      %100 = dma.done [#allocation4], 128
    $region33: #{tpu_custom_call.1} parent=1 // pred_fallthru
      _
    %101 = vsyncpa [#allocation3], 1
    %102 = vsyncpa [#allocation6], 1
    %103 = vsyncpa [#allocation4], 1

</llo_original>
